<compile_context>
chip_gen: v7x
topology: tpu7x:2x2x1
jax: 0.10.0
libtpu: 0.0.40
codegen_flags: <defaults>
</compile_context>

<pallas_src>
import functools

import jax
import jax.numpy as jnp
from jax.experimental import pallas as pl
from jax.experimental.pallas import tpu as pltpu


def critic_kernel(x_ref, w_ref, b_ref, out_ref, *, compute_dtype):
    """One batch tile of the critic MLP, computed feature-major.

    x_ref:   (H, TM)   compute_dtype -- transposed, zero-padded states
    w_ref:   (4, H, H) compute_dtype -- transposed weights (slot 3: wf^T in row 0)
    b_ref:   (4, H, 1) float32       -- bias columns (slot 3: bf at [0, 0])
    out_ref: (1, TM)   float32       -- lane-dense values for this batch tile
    """
    x = x_ref[...]

    # fci + relu. Padded weight columns are zero, so padded state rows are ignored.
    h = jnp.dot(w_ref[0], x, preferred_element_type=jnp.float32) + b_ref[0]
    h = jnp.maximum(h, 0.0)

    # fc1 + relu
    h = jnp.dot(w_ref[1], h.astype(compute_dtype),
                preferred_element_type=jnp.float32) + b_ref[1]
    h = jnp.maximum(h, 0.0)

    # fc2 + tanh (activations kept in f32)
    h = jnp.dot(w_ref[2], h.astype(compute_dtype),
                preferred_element_type=jnp.float32) + b_ref[2]
    h = jnp.tanh(h)

    # fcf: slot-3 weight carries wf^T in row 0 (other rows zero); row 0 of the
    # result is the scalar value per column -> (1, TM), already lane-dense.
    v = jnp.dot(w_ref[3], h.astype(compute_dtype),
                preferred_element_type=jnp.float32) + b_ref[3]
    out_ref[...] = v[0:1, :].astype(out_ref.dtype)


def pack_params(params, state_dim, hidden_dim, compute_dtype):
    """Pack the 8 linear-layer tensors into 2 blobs (transposed / feature-major)."""
    H = hidden_dim
    w_blob = jnp.zeros((4, H, H), jnp.float32)
    w_blob = w_blob.at[0, :, :state_dim].set(params["wi"].T)   # (H, state_dim), rest 0
    w_blob = w_blob.at[1].set(params["w1"].T)
    w_blob = w_blob.at[2].set(params["w2"].T)
    w_blob = w_blob.at[3, 0, :].set(params["wf"][:, 0])        # wf^T as row 0

    b_blob = jnp.zeros((4, H, 1), jnp.float32)
    b_blob = b_blob.at[0].set(params["bi"].T)
    b_blob = b_blob.at[1].set(params["b1"].T)
    b_blob = b_blob.at[2].set(params["b2"].T)
    b_blob = b_blob.at[3, 0, 0].set(params["bf"][0, 0])
    return w_blob.astype(compute_dtype), b_blob


@functools.partial(jax.jit, static_argnames=("tile_m", "compute_dtype"))
def critic_forward(state, params, *, tile_m=256, compute_dtype=jnp.float32):
    """state: (B, state_dim) f32; params: dict of (in,out) weights + (1,out) biases."""
    B, state_dim = state.shape
    H = params["w1"].shape[0]

    w_blob, b_blob = pack_params(params, state_dim, H, compute_dtype)

    n_tiles = pl.cdiv(B, tile_m)
    b_pad = n_tiles * tile_m

    # Feature-major, zero-padded state: (H, B_pad).  Rows >= state_dim are zero
    # (matching zero weight columns), columns >= B are padding sliced off below.
    x_t = jnp.zeros((H, b_pad), compute_dtype)
    x_t = x_t.at[:state_dim, :B].set(state.T.astype(compute_dtype))

    kernel = functools.partial(critic_kernel, compute_dtype=compute_dtype)

    out = pl.pallas_call(
        kernel,
        out_shape=jax.ShapeDtypeStruct((1, b_pad), jnp.float32),
        grid=(n_tiles,),
        in_specs=[
            pl.BlockSpec((H, tile_m), lambda i: (0, i)),       # state tile, per step
            pl.BlockSpec((4, H, H), lambda i: (0, 0, 0)),      # weights, resident
            pl.BlockSpec((4, H, 1), lambda i: (0, 0, 0)),      # biases, resident
        ],
        out_specs=pl.BlockSpec((1, tile_m), lambda i: (0, i)),  # lane-dense row
        compiler_params=pltpu.CompilerParams(
            dimension_semantics=("parallel",)),
    )(x_t, w_blob, b_blob)

    return out[0, :B].reshape(B, 1)


def init_params(key, state_dim, hidden_dim):
    """Deterministic init mimicking nn.Linear default (uniform +/- 1/sqrt(fan_in))."""
    def linear(key, fan_in, fan_out):
        kw, kb = jax.random.split(key)
        bound = 1.0 / jnp.sqrt(jnp.float32(fan_in))
        w = jax.random.uniform(kw, (fan_in, fan_out), jnp.float32, -bound, bound)
        b = jax.random.uniform(kb, (1, fan_out), jnp.float32, -bound, bound)
        return w, b

    k0, k1, k2, k3 = jax.random.split(key, 4)
    wi, bi = linear(k0, state_dim, hidden_dim)
    w1, b1 = linear(k1, hidden_dim, hidden_dim)
    w2, b2 = linear(k2, hidden_dim, hidden_dim)
    wf, bf = linear(k3, hidden_dim, 1)
    return dict(wi=wi, bi=bi, w1=w1, b1=b1, w2=w2, b2=b2, wf=wf, bf=bf)


def critic_reference(state, p):
    h = jnp.maximum(state @ p["wi"] + p["bi"], 0.0)
    h = jnp.maximum(h @ p["w1"] + p["b1"], 0.0)
    h = jnp.tanh(h @ p["w2"] + p["b2"])
    return h @ p["wf"] + p["bf"]


if __name__ == "__main__":
    key = jax.random.PRNGKey(0)
    k_params, k_state = jax.random.split(key)

    state_dim, hidden_dim = 2, 32
    params = init_params(k_params, state_dim, hidden_dim)

    # Batched case: 4 grid steps of 256 rows each.
    B = 1024
    state = jax.random.normal(k_state, (B, state_dim), jnp.float32)
    ref = critic_reference(state, params)

    out_f32 = jax.block_until_ready(
        critic_forward(state, params, tile_m=256, compute_dtype=jnp.float32))
    assert out_f32.shape == (B, 1)
    assert jnp.allclose(out_f32, ref, atol=1e-4, rtol=1e-4), \
        float(jnp.max(jnp.abs(out_f32 - ref)))

    # bf16 MXU inputs (v6e/v7x fast path), f32 accumulation -> looser tolerance.
    out_bf16 = jax.block_until_ready(
        critic_forward(state, params, tile_m=256, compute_dtype=jnp.bfloat16))
    assert jnp.allclose(out_bf16, ref, atol=5e-2, rtol=5e-2), \
        float(jnp.max(jnp.abs(out_bf16 - ref)))

    # Ragged small batch (exercises pad-to-tile + slice path).
    small = jax.random.normal(jax.random.PRNGKey(1), (5, state_dim), jnp.float32)
    out_small = jax.block_until_ready(
        critic_forward(small, params, tile_m=256, compute_dtype=jnp.float32))
    assert out_small.shape == (5, 1)
    assert jnp.allclose(out_small, critic_reference(small, params),
                        atol=1e-4, rtol=1e-4)

    print("KERNEL_OK")
</pallas_src>

<mosaic_0001>
module attributes {stable_mosaic.version = 11 : i64} {
  func.func @critic_kernel(%arg0: i32, %arg1: memref<32x256xf32, #tpu.memory_space<vmem>>, %arg2: memref<4x32x32xf32, #tpu.memory_space<vmem>>, %arg3: memref<4x32x1xf32, #tpu.memory_space<vmem>>, %arg4: memref<1x256xf32, #tpu.memory_space<vmem>>) attributes {dimension_semantics = [#tpu.dimension_semantics<parallel>], iteration_bounds = array<i64: 4>, scalar_prefetch = 0 : i64, scratch_operands = 0 : i64, tpu.core_type = #tpu.core_type<tc>, window_params = [{transform_indices = @transform_0, window_bounds = array<i64: 32, 256>}, {pipeline_mode = #tpu.pipeline_mode<synchronous>, transform_indices = @transform_1, window_bounds = array<i64: 4, 32, 32>}, {pipeline_mode = #tpu.pipeline_mode<synchronous>, transform_indices = @transform_2, window_bounds = array<i64: 4, 32, 1>}, {transform_indices = @transform_3, window_bounds = array<i64: 1, 256>}]} {
    %c0 = arith.constant 0 : index
    %c0_0 = arith.constant 0 : index
    %0 = vector.load %arg1[%c0, %c0_0] : memref<32x256xf32, #tpu.memory_space<vmem>>, vector<32x256xf32>
    %c0_1 = arith.constant 0 : index
    %c0_2 = arith.constant 0 : index
    %c0_3 = arith.constant 0 : index
    %1 = vector.load %arg2[%c0_1, %c0_2, %c0_3] : memref<4x32x32xf32, #tpu.memory_space<vmem>>, vector<1x32x32xf32>
    %2 = vector.shape_cast %1 : vector<1x32x32xf32> to vector<32x32xf32>
    %cst = arith.constant dense<0.000000e+00> : vector<32x256xf32>
    %3 = tpu.matmul %2, %0, %cst {dimension_numbers = #tpu.dot_dimension_numbers<[1], [0], [0], [1], [0, 0, 1, 1], [], []>} : vector<32x32xf32>, vector<32x256xf32>, vector<32x256xf32> -> vector<32x256xf32>
    %c0_4 = arith.constant 0 : index
    %c0_5 = arith.constant 0 : index
    %c0_6 = arith.constant 0 : index
    %4 = vector.load %arg3[%c0_4, %c0_5, %c0_6] : memref<4x32x1xf32, #tpu.memory_space<vmem>>, vector<1x32x1xf32>
    %5 = vector.shape_cast %4 : vector<1x32x1xf32> to vector<32x1xf32>
    %6 = vector.broadcast %5 : vector<32x1xf32> to vector<32x256xf32>
    %7 = arith.addf %3, %6 : vector<32x256xf32>
    %cst_7 = arith.constant 0.000000e+00 : f32
    %8 = vector.broadcast %cst_7 : f32 to vector<32x256xf32>
    %9 = arith.maximumf %7, %8 : vector<32x256xf32>
    %c1 = arith.constant 1 : index
    %c0_8 = arith.constant 0 : index
    %c0_9 = arith.constant 0 : index
    %10 = vector.load %arg2[%c1, %c0_8, %c0_9] : memref<4x32x32xf32, #tpu.memory_space<vmem>>, vector<1x32x32xf32>
    %11 = vector.shape_cast %10 : vector<1x32x32xf32> to vector<32x32xf32>
    %cst_10 = arith.constant dense<0.000000e+00> : vector<32x256xf32>
    %12 = tpu.matmul %11, %9, %cst_10 {dimension_numbers = #tpu.dot_dimension_numbers<[1], [0], [0], [1], [0, 0, 1, 1], [], []>} : vector<32x32xf32>, vector<32x256xf32>, vector<32x256xf32> -> vector<32x256xf32>
    %c1_11 = arith.constant 1 : index
    %c0_12 = arith.constant 0 : index
    %c0_13 = arith.constant 0 : index
    %13 = vector.load %arg3[%c1_11, %c0_12, %c0_13] : memref<4x32x1xf32, #tpu.memory_space<vmem>>, vector<1x32x1xf32>
    %14 = vector.shape_cast %13 : vector<1x32x1xf32> to vector<32x1xf32>
    %15 = vector.broadcast %14 : vector<32x1xf32> to vector<32x256xf32>
    %16 = arith.addf %12, %15 : vector<32x256xf32>
    %cst_14 = arith.constant 0.000000e+00 : f32
    %17 = vector.broadcast %cst_14 : f32 to vector<32x256xf32>
    %18 = arith.maximumf %16, %17 : vector<32x256xf32>
    %c2 = arith.constant 2 : index
    %c0_15 = arith.constant 0 : index
    %c0_16 = arith.constant 0 : index
    %19 = vector.load %arg2[%c2, %c0_15, %c0_16] : memref<4x32x32xf32, #tpu.memory_space<vmem>>, vector<1x32x32xf32>
    %20 = vector.shape_cast %19 : vector<1x32x32xf32> to vector<32x32xf32>
    %cst_17 = arith.constant dense<0.000000e+00> : vector<32x256xf32>
    %21 = tpu.matmul %20, %18, %cst_17 {dimension_numbers = #tpu.dot_dimension_numbers<[1], [0], [0], [1], [0, 0, 1, 1], [], []>} : vector<32x32xf32>, vector<32x256xf32>, vector<32x256xf32> -> vector<32x256xf32>
    %c2_18 = arith.constant 2 : index
    %c0_19 = arith.constant 0 : index
    %c0_20 = arith.constant 0 : index
    %22 = vector.load %arg3[%c2_18, %c0_19, %c0_20] : memref<4x32x1xf32, #tpu.memory_space<vmem>>, vector<1x32x1xf32>
    %23 = vector.shape_cast %22 : vector<1x32x1xf32> to vector<32x1xf32>
    %24 = vector.broadcast %23 : vector<32x1xf32> to vector<32x256xf32>
    %25 = arith.addf %21, %24 : vector<32x256xf32>
    %26 = math.tanh %25 : vector<32x256xf32>
    %c3 = arith.constant 3 : index
    %c0_21 = arith.constant 0 : index
    %c0_22 = arith.constant 0 : index
    %27 = vector.load %arg2[%c3, %c0_21, %c0_22] : memref<4x32x32xf32, #tpu.memory_space<vmem>>, vector<1x32x32xf32>
    %28 = vector.shape_cast %27 : vector<1x32x32xf32> to vector<32x32xf32>
    %cst_23 = arith.constant dense<0.000000e+00> : vector<32x256xf32>
    %29 = tpu.matmul %28, %26, %cst_23 {dimension_numbers = #tpu.dot_dimension_numbers<[1], [0], [0], [1], [0, 0, 1, 1], [], []>} : vector<32x32xf32>, vector<32x256xf32>, vector<32x256xf32> -> vector<32x256xf32>
    %c3_24 = arith.constant 3 : index
    %c0_25 = arith.constant 0 : index
    %c0_26 = arith.constant 0 : index
    %30 = vector.load %arg3[%c3_24, %c0_25, %c0_26] : memref<4x32x1xf32, #tpu.memory_space<vmem>>, vector<1x32x1xf32>
    %31 = vector.shape_cast %30 : vector<1x32x1xf32> to vector<32x1xf32>
    %32 = vector.broadcast %31 : vector<32x1xf32> to vector<32x256xf32>
    %33 = arith.addf %29, %32 : vector<32x256xf32>
    %34 = vector.extract_strided_slice %33 {offsets = [0, 0], sizes = [1, 256], strides = [1, 1]} : vector<32x256xf32> to vector<1x256xf32>
    %c0_27 = arith.constant 0 : index
    %c0_28 = arith.constant 0 : index
    %35 = vector.load %arg4[%c0_27, %c0_28] : memref<1x256xf32, #tpu.memory_space<vmem>>, vector<1x256xf32>
    tpu.vector_store %arg4[%c0_27, %c0_28], %34 {strides = array<i32>} : memref<1x256xf32, #tpu.memory_space<vmem>>, vector<1x256xf32>,
    return
  }
  func.func @transform_0(%arg0: i32) -> (i32, i32) {
    %c0_i32 = arith.constant 0 : i32
    %c0_i32_0 = arith.constant 0 : i32
    return %c0_i32, %arg0 : i32, i32
  }
  func.func @transform_1(%arg0: i32) -> (i32, i32, i32) {
    %c0_i32 = arith.constant 0 : i32
    %c0_i32_0 = arith.constant 0 : i32
    %c0_i32_1 = arith.constant 0 : i32
    %c0_i32_2 = arith.constant 0 : i32
    return %c0_i32, %c0_i32_0, %c0_i32_1 : i32, i32, i32
  }
  func.func @transform_2(%arg0: i32) -> (i32, i32, i32) {
    %c0_i32 = arith.constant 0 : i32
    %c0_i32_0 = arith.constant 0 : i32
    %c0_i32_1 = arith.constant 0 : i32
    %c0_i32_2 = arith.constant 0 : i32
    return %c0_i32, %c0_i32_0, %c0_i32_1 : i32, i32, i32
  }
  func.func @transform_3(%arg0: i32) -> (i32, i32) {
    %c0_i32 = arith.constant 0 : i32
    %c0_i32_0 = arith.constant 0 : i32
    return %c0_i32, %arg0 : i32, i32
  }
}

</mosaic_0001>

<llo_original>
// kernel: critic_forward.1
$region0: #{critic_forward.1}
  #allocation0 [shape = 'u32[]', space=smem, size = 0x4, offset = 0x4, fixed_abs, tag = 'smem constant byte address 0x4 - core index']
  #allocation1 [shape = 'u32[144,128]{1,0:T(1,128)}', space=vmem, size = 0x12000, scoped, tag = 'internal scratch']
  %s0 = inlined_call_operand.vmem [shape: f32[32,1024], index: 0, kind: input, shape index: {}]
  %s1 = inlined_call_operand.vmem [shape: f32[4,32,32], index: 1, kind: input, shape index: {}]
  %s2 = inlined_call_operand.vmem [shape: f32[4,32,1], index: 2, kind: input, shape index: {}]
  %s3 = inlined_call_operand.hbm [shape: f32[1,1024], index: 3, kind: output, shape index: {}]
  %s4 = sld [smem:[#allocation0]]
  $region68: #{critic_forward.1} parent=0
    _
  %s6 = ssub.s32 1, %s4
  %s7 = scalar_select 0, %s6, %s4
  $region1: #{critic_forward.1} parent=0
    #allocation2 [shape = 'u8[65536]{0}', space=vmem, size = 0x10000, scoped, tag = 'input window, operand 0']
    #allocation3 [shape = 'u8[2048]{0}', space=vmem, size = 0x800, scoped, tag = 'output window, operand 0']
    #allocation4 [shape = 's32[2]{0}', space=sflag, size = 0x8, scoped, tag = 'scoped memory for critic_forward.1']
    %8 = vsyncpa [#allocation4], 0
    %s9 = scalar_lea.sflag [#allocation4], 1
    %10 = vsyncpa %s9, 0
    loop: start=0, step=1, limit=6
    $region2: #{critic_forward.1} parent=1 // loop_pre_header
      _
    $region3: #{critic_forward.1} parent=1 // loop_header
      %s12 = sphi 0, %s16
      %p13 = scmp.ge.s32.totalorder %s12, 6
      %s22 = sphi 0, %s24
      %s25 = sphi 0, %s22
      %s26 = sphi 0, %s25
      %s42 = sphi 0, %s26
      %s46 = sphi 0, %s46
      %s48 = sphi 0, %s46
      %s49 = sphi 0, %s48
      %s63 = sphi 0, %s49
      %s67 = sphi 0, %s67
      %s69 = sphi 0, %s67
      %s70 = sphi 0, %s69
      %s84 = sphi 0, %s70
      %s90 = sphi 0, %s92
      %s93 = sphi 0, %s90
      %s94 = sphi 0, %s93
      %s110 = sphi 0, %s94
    $region4: #{critic_forward.1} parent=1 // loop_header_branch
      %15 = sbr.rel (%p13) target = $region8
    $region5: #{critic_forward.1} parent=1 // loop_body
      %s17 = ssub.s32 %s12, 1
      %s18 = ssub.s32 %s12, 2
      %s19 = sadd.s32 %s12, 1
      %s20 = ssub.s32 %s12, %s19
      %p21 = scmp.eq.s32.totalorder %s20, 0
      %s23 = sadd.s32 %s22, 1
      %s24 = scalar_select %p21, %s22, %s23
      %p27 = pneg %p21
      %p28 = scmp.eq.s32.totalorder %s12, 3
      %p29 = por %p27, %p28
      %p30 = scmp.ne.s32.totalorder %s22, %s25
      %p31 = scmp.eq.s32.totalorder %s12, 0
      %p32 = por %p30, %p31
      %p33 = scmp.ne.s32.totalorder %s22, %s25
      %p34 = scmp.eq.s32.totalorder %s17, 3
      %p35 = por %p33, %p34
      %p36 = scmp.ne.s32.totalorder %s25, %s26
      %p37 = scmp.eq.s32.totalorder %s17, 0
      %p38 = por %p36, %p37
      %p39 = scmp.ne.s32.totalorder %s25, %s26
      %p40 = scmp.eq.s32.totalorder %s18, 3
      %p41 = por %p39, %p40
      %p43 = scmp.ne.s32.totalorder %s26, %s42
      %p44 = scmp.eq.s32.totalorder %s18, 0
      %p45 = por %p43, %p44
      %s47 = sadd.s32 %s46, 1
      %p50 = scmp.eq.s32.totalorder %s12, 3
      %p51 = scmp.ne.s32.totalorder %s46, %s48
      %p52 = scmp.eq.s32.totalorder %s12, 0
      %p53 = por %p51, %p52
      %p54 = scmp.ne.s32.totalorder %s46, %s48
      %p55 = scmp.eq.s32.totalorder %s17, 3
      %p56 = por %p54, %p55
      %p57 = scmp.ne.s32.totalorder %s48, %s49
      %p58 = scmp.eq.s32.totalorder %s17, 0
      %p59 = por %p57, %p58
      %p60 = scmp.ne.s32.totalorder %s48, %s49
      %p61 = scmp.eq.s32.totalorder %s18, 3
      %p62 = por %p60, %p61
      %p64 = scmp.ne.s32.totalorder %s49, %s63
      %p65 = scmp.eq.s32.totalorder %s18, 0
      %p66 = por %p64, %p65
      %s68 = sadd.s32 %s67, 1
      %p71 = scmp.eq.s32.totalorder %s12, 3
      %p72 = scmp.ne.s32.totalorder %s67, %s69
      %p73 = scmp.eq.s32.totalorder %s12, 0
      %p74 = por %p72, %p73
      %p75 = scmp.ne.s32.totalorder %s67, %s69
      %p76 = scmp.eq.s32.totalorder %s17, 3
      %p77 = por %p75, %p76
      %p78 = scmp.ne.s32.totalorder %s69, %s70
      %p79 = scmp.eq.s32.totalorder %s17, 0
      %p80 = por %p78, %p79
      %p81 = scmp.ne.s32.totalorder %s69, %s70
      %p82 = scmp.eq.s32.totalorder %s18, 3
      %p83 = por %p81, %p82
      %p85 = scmp.ne.s32.totalorder %s70, %s84
      %p86 = scmp.eq.s32.totalorder %s18, 0
      %p87 = por %p85, %p86
      %s88 = ssub.s32 %s12, %s19
      %p89 = scmp.eq.s32.totalorder %s88, 0
      %s91 = sadd.s32 %s90, 1
      %s92 = scalar_select %p89, %s90, %s91
      %p95 = pneg %p89
      %p96 = scmp.eq.s32.totalorder %s12, 3
      %p97 = por %p95, %p96
      %p98 = scmp.ne.s32.totalorder %s90, %s93
      %p99 = scmp.eq.s32.totalorder %s12, 0
      %p100 = por %p98, %p99
      %p101 = scmp.ne.s32.totalorder %s90, %s93
      %p102 = scmp.eq.s32.totalorder %s17, 3
      %p103 = por %p101, %p102
      %p104 = scmp.ne.s32.totalorder %s93, %s94
      %p105 = scmp.eq.s32.totalorder %s17, 0
      %p106 = por %p104, %p105
      %p107 = scmp.ne.s32.totalorder %s93, %s94
      %p108 = scmp.eq.s32.totalorder %s18, 3
      %p109 = por %p107, %p108
      %p111 = scmp.ne.s32.totalorder %s94, %s110
      %p112 = scmp.eq.s32.totalorder %s18, 0
      %p113 = por %p111, %p112
      %p114 = scmp.le.s32.totalorder 1, %s12
      %p115 = scmp.lt.s32.totalorder %s12, 5
      %p116 = pnand %p114, %p115
      %p117 = pneg %p116
      // Predicated region
      $region9: #{critic_forward.1} parent=5 // pred_check
        _
      $region10: #{critic_forward.1} parent=5 // pred_check_branch
        %119 = sbr.rel (%p116) target = $region12
      $region11: #{critic_forward.1} parent=5 // pred_region
        %s120 = ssub.s32 %s12, 1
        // Predicated region
        $region13: #{critic_forward.1} parent=11 // pred_check
          %p121 = pneg %p59
        $region14: #{critic_forward.1} parent=11 // pred_check_branch
          %123 = sbr.rel (%p121) target = $region16
        $region15: #{critic_forward.1} parent=11 // pred_region
          _
        $region16: #{critic_forward.1} parent=11 // pred_fallthru
          _
        // Predicated region
        $region17: #{critic_forward.1} parent=11 // pred_check
          %p124 = pneg %p80
        $region18: #{critic_forward.1} parent=11 // pred_check_branch
          %126 = sbr.rel (%p124) target = $region20
        $region19: #{critic_forward.1} parent=11 // pred_region
          _
        $region20: #{critic_forward.1} parent=11 // pred_fallthru
          _
      $region12: #{critic_forward.1} parent=5 // pred_fallthru
        _
      %p127 = scmp.lt.s32.totalorder %s12, 4
      // Predicated region
      $region21: #{critic_forward.1} parent=5 // pred_check
        %p128 = pneg %p127
      $region22: #{critic_forward.1} parent=5 // pred_check_branch
        %130 = sbr.rel (%p128) target = $region24
      $region23: #{critic_forward.1} parent=5 // pred_region
        // Predicated region
        $region25: #{critic_forward.1} parent=23 // pred_check
          %p131 = pneg %p32
        $region26: #{critic_forward.1} parent=23 // pred_check_branch
          %133 = sbr.rel (%p131) target = $region28
        $region27: #{critic_forward.1} parent=23 // pred_region
          %s134 = sand.u32 %s22, 1
          %s135 = sand.u32 %s22, 1
          %s136 = smul.addr %s135, 64
          %s137 = scalar_lea.vmem [#allocation2], %s136
          %s138 = smul.u32 2, %s12
          %s139 = smul.addr %s138, 8
          %s140 = scalar_lea.vmem %s0, %s139
          // Predicated region
          $region29: #{critic_forward.1} parent=27 // pred_check
            _
          $region30: #{critic_forward.1} parent=27 // pred_check_branch
            %142 = sbr.rel (0) target = $region32
          $region31: #{critic_forward.1} parent=27 // pred_region
            // Predicated region
            $region33: #{critic_forward.1} parent=31 // pred_check
              _
            $region34: #{critic_forward.1} parent=31 // pred_check_branch
              %144 = sbr.rel (0) target = $region36
            $region35: #{critic_forward.1} parent=31 // pred_region
              loop: start=0, step=1, limit=1
              $region37: #{critic_forward.1} parent=35 // loop_pre_header
                _
              $region38: #{critic_forward.1} parent=35 // loop_header
                %s146 = sphi 0, %s150
                %p147 = scmp.ge.s32.totalorder %s146, 1
                %s151 = sphi %s140, %s140
                %s152 = sphi %s137, %s137
              $region39: #{critic_forward.1} parent=35 // loop_header_branch
                %149 = sbr.rel (%p147) target = $region43
              $region40: #{critic_forward.1} parent=35 // loop_body
                %v153 = vld [vmem:[%s151] sm:$0xff]
                %154 = vst [vmem:[%s152] sm:$0xff] %v153
                %v155 = vld [vmem:[%s151 + $0x8] sm:$0xff]
                %156 = vst [vmem:[%s152 + $0x8] sm:$0xff] %v155
                %v157 = vld [vmem:[%s151 + $0x40] sm:$0xff]
                %158 = vst [vmem:[%s152 + $0x10] sm:$0xff] %v157
                %v159 = vld [vmem:[%s151 + $0x48] sm:$0xff]
                %160 = vst [vmem:[%s152 + $0x18] sm:$0xff] %v159
                %v161 = vld [vmem:[%s151 + $0x80] sm:$0xff]
                %162 = vst [vmem:[%s152 + $0x20] sm:$0xff] %v161
                %v163 = vld [vmem:[%s151 + $0x88] sm:$0xff]
                %164 = vst [vmem:[%s152 + $0x28] sm:$0xff] %v163
                %v165 = vld [vmem:[%s151 + $0xc0] sm:$0xff]
                %166 = vst [vmem:[%s152 + $0x30] sm:$0xff] %v165
                %v167 = vld [vmem:[%s151 + $0xc8] sm:$0xff]
                %168 = vst [vmem:[%s152 + $0x38] sm:$0xff] %v167
              $region41: #{critic_forward.1} parent=35 // loop_footer
                %s150 = sadd.s32 1, %s146
              $region42: #{critic_forward.1} parent=35 // loop_footer_branch
                %145 = sbr.rel target = $region38
              $region43: #{critic_forward.1} parent=35 // loop_exit
                _
            $region36: #{critic_forward.1} parent=31 // pred_fallthru
              _
            // Predicated region
            $region44: #{critic_forward.1} parent=31 // pred_check
              _
            $region45: #{critic_forward.1} parent=31 // pred_check_branch
              %170 = sbr.rel target = $region47
            $region46: #{critic_forward.1} parent=31 // pred_region
              _
            $region47: #{critic_forward.1} parent=31 // pred_fallthru
              _
          $region32: #{critic_forward.1} parent=27 // pred_fallthru
            _
          %171 = vnop
        $region28: #{critic_forward.1} parent=23 // pred_fallthru
          _
      $region24: #{critic_forward.1} parent=5 // pred_fallthru
        _
      %p172 = scmp.le.s32.totalorder 1, %s12
      %p173 = scmp.lt.s32.totalorder %s12, 5
      %p174 = pnand %p172, %p173
      %p175 = pneg %p174
      // Predicated region
      $region48: #{critic_forward.1} parent=5 // pred_check
        _
      $region49: #{critic_forward.1} parent=5 // pred_check_branch
        %177 = sbr.rel (%p174) target = $region51
      $region50: #{critic_forward.1} parent=5 // pred_region
        %s178 = ssub.s32 %s12, 1
        %s179 = sand.u32 %s25, 1
        %s180 = sand.u32 %s25, 1
        %s181 = smul.addr %s180, 64
        %s182 = scalar_lea.vmem [#allocation2], %s181
        // Predicated region
        $region52: #{critic_forward.1} parent=50 // pred_check
          %p183 = pneg %p38
        $region53: #{critic_forward.1} parent=50 // pred_check_branch
          %185 = sbr.rel (%p183) target = $region55
        $region54: #{critic_forward.1} parent=50 // pred_region
          _
        $region55: #{critic_forward.1} parent=50 // pred_fallthru
          _
        %s186 = sand.u32 %s25, 1
        %s187 = sand.u32 %s25, 1
        %s188 = smul.addr %s187, 64
        %s189 = scalar_lea.vmem [#allocation2], %s188
        %p190 = pneg %p38
        %p191 = pneg %p35
        %p192 = pneg %p59
        %p193 = pneg %p56
        %p194 = pneg %p80
        %p195 = pneg %p77
        %p196 = pneg %p106
        %p197 = pneg %p103
        %s198 = sand.u32 %s93, 1
        %s199 = scalar_lea.sflag [#allocation4], %s198
        %s200 = sand.u32 %s93, 1
        %s201 = smul.addr %s200, 2
        %s202 = scalar_lea.vmem [#allocation3], %s201
        %s203 = smul.u32 2, %s17
        %s204 = smul.u32 2, %s17
        %v205 = vld [vmem:[%s182] sm:$0xff]
        %v206 = vld [vmem:[%s182 + $0x8] sm:$0xff]
        %v207 = vld [vmem:[%s182 + $0x10] sm:$0xff]
        %v208 = vld [vmem:[%s182 + $0x18] sm:$0xff]
        %v209 = vld [vmem:[%s182 + $0x20] sm:$0xff]
        %v210 = vld [vmem:[%s182 + $0x28] sm:$0xff]
        %v211 = vld [vmem:[%s182 + $0x30] sm:$0xff]
        %v212 = vld [vmem:[%s182 + $0x38] sm:$0xff]
        %v213 = vld [vmem:[%s1] sm:$0xff]
        %v214 = vld [vmem:[%s1 + $0x8] sm:$0xff]
        %v215 = vld [vmem:[%s1 + $0x10] sm:$0xff]
        %v216 = vld [vmem:[%s1 + $0x18] sm:$0xff]
        %v217 = vld [vmem:[%s2] sm:$0xff]
        %v218 = vld [vmem:[%s2 + $0x8] sm:$0xff]
        %v219 = vld [vmem:[%s2 + $0x10] sm:$0xff]
        %v220 = vld [vmem:[%s2 + $0x18] sm:$0xff]
        %222 = vset.pattern.permute.xlu0 0
        %223 = vperm.xlu0 %222, %v217
        %v224 = vpop.permute.xlu0 %223
        %227 = vset.pattern.permute.xlu0 0
        %228 = vperm.xlu0 %227, %v218
        %v229 = vpop.permute.xlu0 %228
        %232 = vset.pattern.permute.xlu0 0
        %233 = vperm.xlu0 %232, %v219
        %v234 = vpop.permute.xlu0 %233
        %237 = vset.pattern.permute.xlu0 0
        %238 = vperm.xlu0 %237, %v220
        %v239 = vpop.permute.xlu0 %238
        %vm241 = vcmask 261120
        %v243 = vsel %vm241, %v213, 0
        %v246 = vsel %vm241, %v214, 0
        %v249 = vsel %vm241, %v215, 0
        %v252 = vsel %vm241, %v216, 0
        %254 = vmatprep.subr.mxu0 %v206
        %255 = vmatpush1.msra.mxu0 %v205
        %256 = vmatprep.subr.mxu0 %v208
        %257 = vmatpush1.msra.mxu0 %v207
        %258 = vmatprep.subr.mxu0 %v210
        %259 = vmatpush1.msra.mxu0 %v209
        %260 = vmatprep.subr.mxu0 %v212
        %261 = vmatpush1.msra.mxu0 %v211
        %262 = vmatprep.subr.mxu0 0.0
        %263 = vmatpush1.msra.mxu0 0.0
        %264 = vmatprep.subr.mxu0 0.0
        %265 = vmatpush1.msra.mxu0 0.0
        %266 = vmatprep.subr.mxu0 0.0
        %267 = vmatpush1.msra.mxu0 0.0
        %268 = vmatprep.subr.mxu0 0.0
        %269 = vmatpush1.msra.mxu0 0.0
        %270 = vmatprep.subr.mxu0 0.0
        %271 = vmatpush1.msra.mxu0 0.0
        %272 = vmatprep.subr.mxu0 0.0
        %273 = vmatpush1.msra.mxu0 0.0
        %274 = vmatprep.subr.mxu0 0.0
        %275 = vmatpush1.msra.mxu0 0.0
        %276 = vmatprep.subr.mxu0 0.0
        %277 = vmatpush1.msra.mxu0 0.0
        %278 = vmatprep.subr.mxu0 0.0
        %279 = vmatpush1.msra.mxu0 0.0
        %280 = vmatprep.subr.mxu0 0.0
        %281 = vmatpush1.msra.mxu0 0.0
        %282 = vmatprep.subr.mxu0 0.0
        %283 = vmatpush1.msra.mxu0 0.0
        %284 = vmatprep.subr.mxu0 0.0
        %285 = vmatpush1.msra.mxu0 0.0
        %286 = vmatprep.subr.mxu0 0.0
        %287 = vmatpush1.msra.mxu0 0.0
        %288 = vmatprep.subr.mxu0 0.0
        %289 = vmatpush1.msra.mxu0 0.0
        %290 = vmatprep.subr.mxu0 0.0
        %291 = vmatpush1.msra.mxu0 0.0
        %292 = vmatprep.subr.mxu0 0.0
        %293 = vmatpush1.msra.mxu0 0.0
        %294 = vmatprep.subr.mxu0 0.0
        %295 = vmatpush1.msra.mxu0 0.0
        %296 = vmatprep.subr.mxu0 0.0
        %297 = vmatpush1.msra.mxu0 0.0
        %298 = vmatprep.subr.mxu0 0.0
        %299 = vmatpush1.msra.mxu0 0.0
        %300 = vmatprep.subr.mxu0 0.0
        %301 = vmatpush1.msra.mxu0 0.0
        %302 = vmatprep.subr.mxu0 0.0
        %303 = vmatpush1.msra.mxu0 0.0
        %304 = vmatprep.subr.mxu0 0.0
        %305 = vmatpush1.msra.mxu0 0.0
        %306 = vmatprep.subr.mxu0 0.0
        %307 = vmatpush1.msra.mxu0 0.0
        %308 = vmatprep.subr.mxu0 0.0
        %309 = vmatpush1.msra.mxu0 0.0
        %310 = vmatprep.subr.mxu0 0.0
        %311 = vmatpush1.msra.mxu0 0.0
        %312 = vmatprep.subr.mxu0 0.0
        %313 = vmatpush1.msra.mxu0 0.0
        %314 = vmatprep.subr.mxu0 0.0
        %315 = vmatpush1.msra.mxu0 0.0
        %316 = vmatprep.subr.mxu0 0.0
        %317 = vmatpush1.msra.mxu0 0.0
        %318 = vmatprep.mubr.f32.mxu0 0.0
        %319 = vmatmul.mubr.f32.gmra.mrb[0].mxu0 %v243
        %v320 = vpop.f32.mrb[0].mxu0
        %v321 = vadd.f32 %v224, %v320
        %v322 = vpop.f32.mrb[0].mxu0
        %v323 = vadd.f32 %v224, %v322
        %324 = vmatprep.mubr.f32.mxu0 0.0
        %325 = vmatmul.mubr.f32.gmra.mrb[0].mxu0 %v246
        %v326 = vpop.f32.mrb[0].mxu0
        %v327 = vadd.f32 %v229, %v326
        %v328 = vpop.f32.mrb[0].mxu0
        %v329 = vadd.f32 %v229, %v328
        %330 = vmatprep.mubr.f32.mxu0 0.0
        %331 = vmatmul.mubr.f32.gmra.mrb[0].mxu0 %v249
        %v332 = vpop.f32.mrb[0].mxu0
        %v333 = vadd.f32 %v234, %v332
        %v334 = vpop.f32.mrb[0].mxu0
        %v335 = vadd.f32 %v234, %v334
        %336 = vmatprep.mubr.f32.mxu0 0.0
        %337 = vmatmul.mubr.f32.gmra.mrb[0].mxu0 %v252
        %v338 = vpop.f32.mrb[0].mxu0
        %v339 = vadd.f32 %v239, %v338
        %v340 = vpop.f32.mrb[0].mxu0
        %v341 = vadd.f32 %v239, %v340
        %342 = vdwg.mxu0
        %v343 = vmax.f32 %v321, 0.0
        %v344 = vmax.f32 %v323, 0.0
        %v345 = vmax.f32 %v327, 0.0
        %v346 = vmax.f32 %v329, 0.0
        %v347 = vmax.f32 %v333, 0.0
        %v348 = vmax.f32 %v335, 0.0
        %v349 = vmax.f32 %v339, 0.0
        %v350 = vmax.f32 %v341, 0.0
        %s351 = scalar_lea.vmem %s1, 32
        %v352 = vld [vmem:[%s351] sm:$0xff]
        %v353 = vld [vmem:[%s351 + $0x8] sm:$0xff]
        %v354 = vld [vmem:[%s351 + $0x10] sm:$0xff]
        %v355 = vld [vmem:[%s351 + $0x18] sm:$0xff]
        %s356 = scalar_lea.vmem %s2, 32
        %v357 = vld [vmem:[%s356] sm:$0xff]
        %v358 = vld [vmem:[%s356 + $0x8] sm:$0xff]
        %v359 = vld [vmem:[%s356 + $0x10] sm:$0xff]
        %v360 = vld [vmem:[%s356 + $0x18] sm:$0xff]
        %362 = vset.pattern.permute.xlu0 0
        %363 = vperm.xlu0 %362, %v357
        %v364 = vpop.permute.xlu0 %363
        %367 = vset.pattern.permute.xlu0 0
        %368 = vperm.xlu0 %367, %v358
        %v369 = vpop.permute.xlu0 %368
        %372 = vset.pattern.permute.xlu0 0
        %373 = vperm.xlu0 %372, %v359
        %v374 = vpop.permute.xlu0 %373
        %377 = vset.pattern.permute.xlu0 0
        %378 = vperm.xlu0 %377, %v360
        %v379 = vpop.permute.xlu0 %378
        %v382 = vsel %vm241, %v352, 0
        %v385 = vsel %vm241, %v353, 0
        %v388 = vsel %vm241, %v354, 0
        %v391 = vsel %vm241, %v355, 0
        %393 = vmatprep.subr.mxu0 %v344
        %394 = vmatpush1.msra.mxu0 %v343
        %395 = vmatprep.subr.mxu0 %v346
        %396 = vmatpush1.msra.mxu0 %v345
        %397 = vmatprep.subr.mxu0 %v348
        %398 = vmatpush1.msra.mxu0 %v347
        %399 = vmatprep.subr.mxu0 %v350
        %400 = vmatpush1.msra.mxu0 %v349
        %401 = vmatprep.subr.mxu0 0.0
        %402 = vmatpush1.msra.mxu0 0.0
        %403 = vmatprep.subr.mxu0 0.0
        %404 = vmatpush1.msra.mxu0 0.0
        %405 = vmatprep.subr.mxu0 0.0
        %406 = vmatpush1.msra.mxu0 0.0
        %407 = vmatprep.subr.mxu0 0.0
        %408 = vmatpush1.msra.mxu0 0.0
        %409 = vmatprep.subr.mxu0 0.0
        %410 = vmatpush1.msra.mxu0 0.0
        %411 = vmatprep.subr.mxu0 0.0
        %412 = vmatpush1.msra.mxu0 0.0
        %413 = vmatprep.subr.mxu0 0.0
        %414 = vmatpush1.msra.mxu0 0.0
        %415 = vmatprep.subr.mxu0 0.0
        %416 = vmatpush1.msra.mxu0 0.0
        %417 = vmatprep.subr.mxu0 0.0
        %418 = vmatpush1.msra.mxu0 0.0
        %419 = vmatprep.subr.mxu0 0.0
        %420 = vmatpush1.msra.mxu0 0.0
        %421 = vmatprep.subr.mxu0 0.0
        %422 = vmatpush1.msra.mxu0 0.0
        %423 = vmatprep.subr.mxu0 0.0
        %424 = vmatpush1.msra.mxu0 0.0
        %425 = vmatprep.subr.mxu0 0.0
        %426 = vmatpush1.msra.mxu0 0.0
        %427 = vmatprep.subr.mxu0 0.0
        %428 = vmatpush1.msra.mxu0 0.0
        %429 = vmatprep.subr.mxu0 0.0
        %430 = vmatpush1.msra.mxu0 0.0
        %431 = vmatprep.subr.mxu0 0.0
        %432 = vmatpush1.msra.mxu0 0.0
        %433 = vmatprep.subr.mxu0 0.0
        %434 = vmatpush1.msra.mxu0 0.0
        %435 = vmatprep.subr.mxu0 0.0
        %436 = vmatpush1.msra.mxu0 0.0
        %437 = vmatprep.subr.mxu0 0.0
        %438 = vmatpush1.msra.mxu0 0.0
        %439 = vmatprep.subr.mxu0 0.0
        %440 = vmatpush1.msra.mxu0 0.0
        %441 = vmatprep.subr.mxu0 0.0
        %442 = vmatpush1.msra.mxu0 0.0
        %443 = vmatprep.subr.mxu0 0.0
        %444 = vmatpush1.msra.mxu0 0.0
        %445 = vmatprep.subr.mxu0 0.0
        %446 = vmatpush1.msra.mxu0 0.0
        %447 = vmatprep.subr.mxu0 0.0
        %448 = vmatpush1.msra.mxu0 0.0
        %449 = vmatprep.subr.mxu0 0.0
        %450 = vmatpush1.msra.mxu0 0.0
        %451 = vmatprep.subr.mxu0 0.0
        %452 = vmatpush1.msra.mxu0 0.0
        %453 = vmatprep.subr.mxu0 0.0
        %454 = vmatpush1.msra.mxu0 0.0
        %455 = vmatprep.subr.mxu0 0.0
        %456 = vmatpush1.msra.mxu0 0.0
        %457 = vmatprep.mubr.f32.mxu0 0.0
        %458 = vmatmul.mubr.f32.gmra.mrb[0].mxu0 %v382
        %v459 = vpop.f32.mrb[0].mxu0
        %v460 = vadd.f32 %v364, %v459
        %v461 = vpop.f32.mrb[0].mxu0
        %v462 = vadd.f32 %v364, %v461
        %463 = vmatprep.mubr.f32.mxu0 0.0
        %464 = vmatmul.mubr.f32.gmra.mrb[0].mxu0 %v385
        %v465 = vpop.f32.mrb[0].mxu0
        %v466 = vadd.f32 %v369, %v465
        %v467 = vpop.f32.mrb[0].mxu0
        %v468 = vadd.f32 %v369, %v467
        %469 = vmatprep.mubr.f32.mxu0 0.0
        %470 = vmatmul.mubr.f32.gmra.mrb[0].mxu0 %v388
        %v471 = vpop.f32.mrb[0].mxu0
        %v472 = vadd.f32 %v374, %v471
        %v473 = vpop.f32.mrb[0].mxu0
        %v474 = vadd.f32 %v374, %v473
        %475 = vmatprep.mubr.f32.mxu0 0.0
        %476 = vmatmul.mubr.f32.gmra.mrb[0].mxu0 %v391
        %v477 = vpop.f32.mrb[0].mxu0
        %v478 = vadd.f32 %v379, %v477
        %v479 = vpop.f32.mrb[0].mxu0
        %v480 = vadd.f32 %v379, %v479
        %481 = vdwg.mxu0
        %v482 = vmax.f32 %v460, 0.0
        %v483 = vmax.f32 %v462, 0.0
        %v484 = vmax.f32 %v466, 0.0
        %v485 = vmax.f32 %v468, 0.0
        %v486 = vmax.f32 %v472, 0.0
        %v487 = vmax.f32 %v474, 0.0
        %v488 = vmax.f32 %v478, 0.0
        %v489 = vmax.f32 %v480, 0.0
        %s490 = scalar_lea.vmem %s1, 64
        %v491 = vld [vmem:[%s490] sm:$0xff]
        %v492 = vld [vmem:[%s490 + $0x8] sm:$0xff]
        %v493 = vld [vmem:[%s490 + $0x10] sm:$0xff]
        %v494 = vld [vmem:[%s490 + $0x18] sm:$0xff]
        %s495 = scalar_lea.vmem %s2, 64
        %v496 = vld [vmem:[%s495] sm:$0xff]
        %v497 = vld [vmem:[%s495 + $0x8] sm:$0xff]
        %v498 = vld [vmem:[%s495 + $0x10] sm:$0xff]
        %v499 = vld [vmem:[%s495 + $0x18] sm:$0xff]
        %501 = vset.pattern.permute.xlu0 0
        %502 = vperm.xlu0 %501, %v496
        %v503 = vpop.permute.xlu0 %502
        %506 = vset.pattern.permute.xlu0 0
        %507 = vperm.xlu0 %506, %v497
        %v508 = vpop.permute.xlu0 %507
        %511 = vset.pattern.permute.xlu0 0
        %512 = vperm.xlu0 %511, %v498
        %v513 = vpop.permute.xlu0 %512
        %516 = vset.pattern.permute.xlu0 0
        %517 = vperm.xlu0 %516, %v499
        %v518 = vpop.permute.xlu0 %517
        %v521 = vsel %vm241, %v491, 0
        %v524 = vsel %vm241, %v492, 0
        %v527 = vsel %vm241, %v493, 0
        %v530 = vsel %vm241, %v494, 0
        %532 = vmatprep.subr.mxu0 %v483
        %533 = vmatpush1.msra.mxu0 %v482
        %534 = vmatprep.subr.mxu0 %v485
        %535 = vmatpush1.msra.mxu0 %v484
        %536 = vmatprep.subr.mxu0 %v487
        %537 = vmatpush1.msra.mxu0 %v486
        %538 = vmatprep.subr.mxu0 %v489
        %539 = vmatpush1.msra.mxu0 %v488
        %540 = vmatprep.subr.mxu0 0.0
        %541 = vmatpush1.msra.mxu0 0.0
        %542 = vmatprep.subr.mxu0 0.0
        %543 = vmatpush1.msra.mxu0 0.0
        %544 = vmatprep.subr.mxu0 0.0
        %545 = vmatpush1.msra.mxu0 0.0
        %546 = vmatprep.subr.mxu0 0.0
        %547 = vmatpush1.msra.mxu0 0.0
        %548 = vmatprep.subr.mxu0 0.0
        %549 = vmatpush1.msra.mxu0 0.0
        %550 = vmatprep.subr.mxu0 0.0
        %551 = vmatpush1.msra.mxu0 0.0
        %552 = vmatprep.subr.mxu0 0.0
        %553 = vmatpush1.msra.mxu0 0.0
        %554 = vmatprep.subr.mxu0 0.0
        %555 = vmatpush1.msra.mxu0 0.0
        %556 = vmatprep.subr.mxu0 0.0
        %557 = vmatpush1.msra.mxu0 0.0
        %558 = vmatprep.subr.mxu0 0.0
        %559 = vmatpush1.msra.mxu0 0.0
        %560 = vmatprep.subr.mxu0 0.0
        %561 = vmatpush1.msra.mxu0 0.0
        %562 = vmatprep.subr.mxu0 0.0
        %563 = vmatpush1.msra.mxu0 0.0
        %564 = vmatprep.subr.mxu0 0.0
        %565 = vmatpush1.msra.mxu0 0.0
        %566 = vmatprep.subr.mxu0 0.0
        %567 = vmatpush1.msra.mxu0 0.0
        %568 = vmatprep.subr.mxu0 0.0
        %569 = vmatpush1.msra.mxu0 0.0
        %570 = vmatprep.subr.mxu0 0.0
        %571 = vmatpush1.msra.mxu0 0.0
        %572 = vmatprep.subr.mxu0 0.0
        %573 = vmatpush1.msra.mxu0 0.0
        %574 = vmatprep.subr.mxu0 0.0
        %575 = vmatpush1.msra.mxu0 0.0
        %576 = vmatprep.subr.mxu0 0.0
        %577 = vmatpush1.msra.mxu0 0.0
        %578 = vmatprep.subr.mxu0 0.0
        %579 = vmatpush1.msra.mxu0 0.0
        %580 = vmatprep.subr.mxu0 0.0
        %581 = vmatpush1.msra.mxu0 0.0
        %582 = vmatprep.subr.mxu0 0.0
        %583 = vmatpush1.msra.mxu0 0.0
        %584 = vmatprep.subr.mxu0 0.0
        %585 = vmatpush1.msra.mxu0 0.0
        %586 = vmatprep.subr.mxu0 0.0
        %587 = vmatpush1.msra.mxu0 0.0
        %588 = vmatprep.subr.mxu0 0.0
        %589 = vmatpush1.msra.mxu0 0.0
        %590 = vmatprep.subr.mxu0 0.0
        %591 = vmatpush1.msra.mxu0 0.0
        %592 = vmatprep.subr.mxu0 0.0
        %593 = vmatpush1.msra.mxu0 0.0
        %594 = vmatprep.subr.mxu0 0.0
        %595 = vmatpush1.msra.mxu0 0.0
        %596 = vmatprep.mubr.f32.mxu0 0.0
        %597 = vmatmul.mubr.f32.gmra.mrb[0].mxu0 %v521
        %v598 = vpop.f32.mrb[0].mxu0
        %v599 = vadd.f32 %v503, %v598
        %v600 = vpop.f32.mrb[0].mxu0
        %v601 = vadd.f32 %v503, %v600
        %602 = vmatprep.mubr.f32.mxu0 0.0
        %603 = vmatmul.mubr.f32.gmra.mrb[0].mxu0 %v524
        %v604 = vpop.f32.mrb[0].mxu0
        %v605 = vadd.f32 %v508, %v604
        %v606 = vpop.f32.mrb[0].mxu0
        %v607 = vadd.f32 %v508, %v606
        %608 = vmatprep.mubr.f32.mxu0 0.0
        %609 = vmatmul.mubr.f32.gmra.mrb[0].mxu0 %v527
        %v610 = vpop.f32.mrb[0].mxu0
        %v611 = vadd.f32 %v513, %v610
        %v612 = vpop.f32.mrb[0].mxu0
        %v613 = vadd.f32 %v513, %v612
        %614 = vmatprep.mubr.f32.mxu0 0.0
        %615 = vmatmul.mubr.f32.gmra.mrb[0].mxu0 %v530
        %v616 = vpop.f32.mrb[0].mxu0
        %v617 = vadd.f32 %v518, %v616
        %v618 = vpop.f32.mrb[0].mxu0
        %v619 = vadd.f32 %v518, %v618
        %620 = vdwg.mxu0
        %v621 = vtanh.pop %v599
        %v622 = vtanh.pop %v601
        %v623 = vtanh.pop %v605
        %v624 = vtanh.pop %v607
        %v625 = vtanh.pop %v611
        %v626 = vtanh.pop %v613
        %v627 = vtanh.pop %v617
        %v628 = vtanh.pop %v619
        %s629 = scalar_lea.vmem %s1, 96
        %v630 = vld [vmem:[%s629] sm:$0xff]
        %v631 = vld [vmem:[%s629 + $0x8] sm:$0xff]
        %v632 = vld [vmem:[%s629 + $0x10] sm:$0xff]
        %v633 = vld [vmem:[%s629 + $0x18] sm:$0xff]
        %s634 = scalar_lea.vmem %s2, 96
        %v635 = vld [vmem:[%s634] sm:$0xff]
        %v636 = vld [vmem:[%s634 + $0x8] sm:$0xff]
        %v637 = vld [vmem:[%s634 + $0x10] sm:$0xff]
        %v638 = vld [vmem:[%s634 + $0x18] sm:$0xff]
        %640 = vset.pattern.permute.xlu0 0
        %641 = vperm.xlu0 %640, %v635
        %v642 = vpop.permute.xlu0 %641
        %645 = vset.pattern.permute.xlu0 0
        %646 = vperm.xlu0 %645, %v636
        %v647 = vpop.permute.xlu0 %646
        %649 = vset.pattern.permute.xlu0 0
        %650 = vperm.xlu0 %649, %v637
        %v651 = vpop.permute.xlu0 %650
        %653 = vset.pattern.permute.xlu0 0
        %654 = vperm.xlu0 %653, %v638
        %v655 = vpop.permute.xlu0 %654
        %v657 = vsel %vm241, %v630, 0
        %v660 = vsel %vm241, %v631, 0
        %v663 = vsel %vm241, %v632, 0
        %v666 = vsel %vm241, %v633, 0
        %668 = vmatprep.subr.mxu0 %v622
        %669 = vmatpush1.msra.mxu0 %v621
        %670 = vmatprep.subr.mxu0 %v624
        %671 = vmatpush1.msra.mxu0 %v623
        %672 = vmatprep.subr.mxu0 %v626
        %673 = vmatpush1.msra.mxu0 %v625
        %674 = vmatprep.subr.mxu0 %v628
        %675 = vmatpush1.msra.mxu0 %v627
        %676 = vmatprep.subr.mxu0 0.0
        %677 = vmatpush1.msra.mxu0 0.0
        %678 = vmatprep.subr.mxu0 0.0
        %679 = vmatpush1.msra.mxu0 0.0
        %680 = vmatprep.subr.mxu0 0.0
        %681 = vmatpush1.msra.mxu0 0.0
        %682 = vmatprep.subr.mxu0 0.0
        %683 = vmatpush1.msra.mxu0 0.0
        %684 = vmatprep.subr.mxu0 0.0
        %685 = vmatpush1.msra.mxu0 0.0
        %686 = vmatprep.subr.mxu0 0.0
        %687 = vmatpush1.msra.mxu0 0.0
        %688 = vmatprep.subr.mxu0 0.0
        %689 = vmatpush1.msra.mxu0 0.0
        %690 = vmatprep.subr.mxu0 0.0
        %691 = vmatpush1.msra.mxu0 0.0
        %692 = vmatprep.subr.mxu0 0.0
        %693 = vmatpush1.msra.mxu0 0.0
        %694 = vmatprep.subr.mxu0 0.0
        %695 = vmatpush1.msra.mxu0 0.0
        %696 = vmatprep.subr.mxu0 0.0
        %697 = vmatpush1.msra.mxu0 0.0
        %698 = vmatprep.subr.mxu0 0.0
        %699 = vmatpush1.msra.mxu0 0.0
        %700 = vmatprep.subr.mxu0 0.0
        %701 = vmatpush1.msra.mxu0 0.0
        %702 = vmatprep.subr.mxu0 0.0
        %703 = vmatpush1.msra.mxu0 0.0
        %704 = vmatprep.subr.mxu0 0.0
        %705 = vmatpush1.msra.mxu0 0.0
        %706 = vmatprep.subr.mxu0 0.0
        %707 = vmatpush1.msra.mxu0 0.0
        %708 = vmatprep.subr.mxu0 0.0
        %709 = vmatpush1.msra.mxu0 0.0
        %710 = vmatprep.subr.mxu0 0.0
        %711 = vmatpush1.msra.mxu0 0.0
        %712 = vmatprep.subr.mxu0 0.0
        %713 = vmatpush1.msra.mxu0 0.0
        %714 = vmatprep.subr.mxu0 0.0
        %715 = vmatpush1.msra.mxu0 0.0
        %716 = vmatprep.subr.mxu0 0.0
        %717 = vmatpush1.msra.mxu0 0.0
        %718 = vmatprep.subr.mxu0 0.0
        %719 = vmatpush1.msra.mxu0 0.0
        %720 = vmatprep.subr.mxu0 0.0
        %721 = vmatpush1.msra.mxu0 0.0
        %722 = vmatprep.subr.mxu0 0.0
        %723 = vmatpush1.msra.mxu0 0.0
        %724 = vmatprep.subr.mxu0 0.0
        %725 = vmatpush1.msra.mxu0 0.0
        %726 = vmatprep.subr.mxu0 0.0
        %727 = vmatpush1.msra.mxu0 0.0
        %728 = vmatprep.subr.mxu0 0.0
        %729 = vmatpush1.msra.mxu0 0.0
        %730 = vmatprep.subr.mxu0 0.0
        %731 = vmatpush1.msra.mxu0 0.0
        %732 = vmatprep.mubr.f32.mxu0 0.0
        %733 = vmatmul.mubr.f32.gmra.mrb[0].mxu0 %v657
        %v734 = vpop.f32.mrb[0].mxu0
        %v735 = vadd.f32 %v642, %v734
        %v736 = vpop.f32.mrb[0].mxu0
        %v737 = vadd.f32 %v642, %v736
        %738 = vmatprep.mubr.f32.mxu0 0.0
        %739 = vmatmul.mubr.f32.gmra.mrb[0].mxu0 %v660
        %v740 = vpop.f32.mrb[0].mxu0
        %v741 = vpop.f32.mrb[0].mxu0
        %742 = vmatprep.mubr.f32.mxu0 0.0
        %743 = vmatmul.mubr.f32.gmra.mrb[0].mxu0 %v663
        %v744 = vpop.f32.mrb[0].mxu0
        %v745 = vpop.f32.mrb[0].mxu0
        %746 = vmatprep.mubr.f32.mxu0 0.0
        %747 = vmatmul.mubr.f32.gmra.mrb[0].mxu0 %v666
        %v748 = vpop.f32.mrb[0].mxu0
        %v749 = vpop.f32.mrb[0].mxu0
        %750 = vdwg.mxu0
        %v753 = vcombine.low %v735, %v737
        %v755 = vunpack.c.l.s4 1966171168
        %v756 = vunpack.c.0.s8 %v755
        %v757 = vlaneseq
        %v758 = vshrl.u32 %v757, 7
        %v759 = vsub.s32 %v756, %v758
        %v760 = vrot.slane %v753, %v759
        %v762 = vunpack.c.l.s4 1966171168
        %v763 = vunpack.c.0.s8 %v762
        %v764 = vlaneseq
        %v765 = vshrl.u32 %v764, 7
        %v766 = vsub.s32 %v763, %v765
        %v767 = vrot.slane %v760, %v766
        %v769 = vlaneseq
        %vm770 = vcmp.ge.s32.totalorder %v769, 0
        %vm771 = vcmp.lt.s32.totalorder %v769, 256
        %vm772 = vmand %vm770, %vm771
        %773 = vst.msk [vmem:[%s202] sm:$0x3] %vm772, %v767
        %s774 = sand.u32 %s93, 1
        %s775 = scalar_lea.sflag [#allocation4], %s774
        %s776 = sand.u32 %s93, 1
        %s777 = smul.addr %s776, 2
        %s778 = scalar_lea.vmem [#allocation3], %s777
        // Predicated region
        $region56: #{critic_forward.1} parent=50 // pred_check
          %p779 = pneg %p103
        $region57: #{critic_forward.1} parent=50 // pred_check_branch
          %781 = sbr.rel (%p779) target = $region59
        $region58: #{critic_forward.1} parent=50 // pred_region
          %s782 = smul.u32 2, %s17
          %s784 = ssub.s32 32, 32
          %785 = vsyncadd %s775, %s784
          %s786 = smul.addr %s782, 16
          %s787 = scalar_lea.hbm %s3, %s786
          %s789 = sshll.u32 %s778, 4
          %s790 = int_to_ptr.vmem [resolvable:$true] %s789
          %792 = dma.vmem_to_hbm [thread:$0]  %s790, 32, %s787, %s775
        $region59: #{critic_forward.1} parent=50 // pred_fallthru
          _
      $region51: #{critic_forward.1} parent=5 // pred_fallthru
        _
      %p793 = scmp.le.s32.totalorder 2, %s12
      // Predicated region
      $region60: #{critic_forward.1} parent=5 // pred_check
        %p794 = pneg %p793
      $region61: #{critic_forward.1} parent=5 // pred_check_branch
        %796 = sbr.rel (%p794) target = $region63
      $region62: #{critic_forward.1} parent=5 // pred_region
        %s797 = ssub.s32 %s12, 2
        // Predicated region
        $region64: #{critic_forward.1} parent=62 // pred_check
          %p798 = pneg %p109
        $region65: #{critic_forward.1} parent=62 // pred_check_branch
          %800 = sbr.rel (%p798) target = $region67
        $region66: #{critic_forward.1} parent=62 // pred_region
          %s801 = sand.u32 %s94, 1
          %s802 = scalar_lea.sflag [#allocation4], %s801
          %s803 = sand.u32 %s94, 1
          %s804 = smul.addr %s803, 2
          %s805 = scalar_lea.vmem [#allocation3], %s804
          %806 = dma.done %s802, 32
        $region67: #{critic_forward.1} parent=62 // pred_fallthru
          _
      $region63: #{critic_forward.1} parent=5 // pred_fallthru
        _
    $region6: #{critic_forward.1} parent=1 // loop_footer
      %s16 = sadd.s32 1, %s12
    $region7: #{critic_forward.1} parent=1 // loop_footer_branch
      %11 = sbr.rel target = $region3
    $region8: #{critic_forward.1} parent=1 // loop_exit
      _
    %807 = vsyncpa [#allocation4], 1
    %s808 = scalar_lea.sflag [#allocation4], 1
    %809 = vsyncpa %s808, 1

</llo_original>
